<compile_context>
chip_gen: v7x
topology: tpu7x:2x2x1
jax: 0.10.0
libtpu: 0.0.40
codegen_flags: <defaults>
</compile_context>

<pallas_src>
import jax
import jax.numpy as jnp
from jax.experimental import pallas as pl
from jax.experimental.pallas import tpu as pltpu
import numpy as np

K = 3  # kernel size (reflection pad = 1, stride = 1); requires H >= 2 and W >= 2


def _banded_weights_reflect(w_hwio, W, pack):
    """Banded 3x3-conv weights with the W-direction reflection padding folded in.

    w_hwio: (3, 3, C, C).  Returns M of shape (3, pack*W*C, pack*W*C) such that, for the
    row-only reflection-padded lane-dense image xp (H+2, pack*W*C):
        y[h] = sum_kh  xp[h+kh, :] @ M[kh]          (y is (H, pack*W*C)).
    `pack` images sharing the lane axis get block-diagonal weights.
    """
    Kh, Kw, C, Co = w_hwio.shape

    def src(q):  # source column of padded column q (pad=1 reflection, edge excluded)
        if q == 0:
            return 1
        if q == W + 1:
            return W - 2
        return q - 1

    mats = []
    for kh in range(Kh):
        m = jnp.zeros((W * C, W * Co), w_hwio.dtype)
        for kw in range(Kw):
            t = np.zeros((W, W), np.float32)
            for j in range(W):
                t[src(j + kw), j] = 1.0  # output col j, tap kw reads source col src(j+kw)
            m = m + jnp.kron(jnp.asarray(t, w_hwio.dtype), w_hwio[kh, kw])
        if pack > 1:
            m = jnp.kron(jnp.eye(pack, dtype=w_hwio.dtype), m)  # block-diagonal per image
        mats.append(m)
    return jnp.stack(mats)  # (3, pack*W*C, pack*W*C)


def _pick_block_groups(num_groups):
    """Packed image groups per grid step: amortize step overhead, keep >=2 steps (v7x 2 TCs)."""
    if num_groups <= 1:
        return 1
    for nb in (8, 4, 2):
        if num_groups % nb == 0 and num_groups // nb >= 2:
            return nb
    return 1


def _residual_block_kernel(x_ref, m1_ref, m2_ref, b_ref, alpha_ref, o_ref, xp_ref):
    # x_ref / o_ref : (Nb, H, L)  lane-dense packed image slabs (L = pack * W * C)
    # m1_ref/m2_ref : (3, L, L)   banded conv weights, bf16, reflection + 0.1 scale folded in
    # b_ref         : (2, L)      lane-tiled biases f32 (row 0 = conv1, row 1 = 0.1*conv2)
    # alpha_ref     : (1, 1)      SMEM scalar (PReLU slope)
    # xp_ref        : VMEM scratch (H+2, L) f32, reused for both convs' row-padded input
    Nb, H, L = x_ref.shape
    alpha = alpha_ref[0, 0]
    b1 = b_ref[0:1, :]
    b2 = b_ref[1:2, :]

    def reflect_pad_rows(img):
        # Row-only reflection pad (pad=1, edge excluded); W-reflection lives in the weights.
        xp_ref[1:H + 1, :] = img.astype(xp_ref.dtype)                   # interior
        xp_ref[0:1, :] = img[1:2, :].astype(xp_ref.dtype)               # top    <- row 1
        xp_ref[H + 1:H + 2, :] = img[H - 2:H - 1, :].astype(xp_ref.dtype)  # bottom <- row H-2

    def conv3x3(m_ref, b_row):
        # 3 lane-dense bf16 MXU matmuls with f32 accumulation; output directly (H, L).
        xp = xp_ref[...].astype(jnp.bfloat16)
        acc = jnp.dot(xp[0:H, :], m_ref[0], preferred_element_type=jnp.float32)
        for kh in range(1, K):
            acc = acc + jnp.dot(xp[kh:kh + H, :], m_ref[kh],
                                preferred_element_type=jnp.float32)
        return acc + b_row

    for i in range(Nb):  # static unrolled loop over packed image groups in this block
        reflect_pad_rows(x_ref[i])
        h = conv3x3(m1_ref, b1)
        h = jnp.where(h >= 0.0, h, alpha * h)        # PReLU (single shared slope)

        reflect_pad_rows(h)
        y = conv3x3(m2_ref, b2)                      # 0.1 already folded into m2 / b2

        # Residual re-read from the (VMEM-resident) input block instead of a long live range.
        o_ref[i] = (y + x_ref[i].astype(jnp.float32)).astype(o_ref.dtype)


def residual_block(x_nchw, w1, b1, w2, b2, alpha):
    """x_nchw: (N, C, H, W) f32.  w1/w2: (3,3,C,C) HWIO.  b1/b2: (C,).  alpha: scalar."""
    N, C, H, W = x_nchw.shape
    assert H >= 2 and W >= 2, "ReflectionPad2d(1) requires H >= 2 and W >= 2"

    WC = W * C
    # Lane packing: put two images side-by-side when that fills 128 lanes.
    P = 2 if (N % 2 == 0 and WC <= 64) else 1
    L = P * WC
    G = N // P                                   # number of packed image groups
    Nb = _pick_block_groups(G)                   # groups per grid step
    grid = (G // Nb,)

    # NCHW -> NHWC -> lane-dense (N, H, W*C); then pack P images into the lane axis.
    x = jnp.transpose(x_nchw, (0, 2, 3, 1)).reshape(N, H, WC)
    if P > 1:
        x = x.reshape(G, P, H, WC).transpose(0, 2, 1, 3).reshape(G, H, L)

    # Banded weights with W-reflection folded in; conv2 gets the 0.1 output scale folded in.
    m1 = _banded_weights_reflect(w1, W, P).astype(jnp.bfloat16)
    m2 = _banded_weights_reflect(w2 * jnp.float32(0.1), W, P).astype(jnp.bfloat16)
    bias = jnp.stack([jnp.tile(b1, P * W),
                      jnp.tile(b2 * jnp.float32(0.1), P * W)]).astype(jnp.float32)  # (2, L)
    alpha_s = jnp.asarray(alpha, jnp.float32).reshape(1, 1)                         # SMEM

    out = pl.pallas_call(
        _residual_block_kernel,
        out_shape=jax.ShapeDtypeStruct((G, H, L), x.dtype),
        grid_spec=pltpu.PrefetchScalarGridSpec(
            num_scalar_prefetch=0,
            grid=grid,
            in_specs=[
                pl.BlockSpec((Nb, H, L), lambda g: (g, 0, 0)),        # packed images
                pl.BlockSpec((K, L, L), lambda g: (0, 0, 0)),         # conv1 weights (bf16)
                pl.BlockSpec((K, L, L), lambda g: (0, 0, 0)),         # conv2 weights (bf16)
                pl.BlockSpec((2, L), lambda g: (0, 0)),               # biases (f32)
                pl.BlockSpec(memory_space=pltpu.MemorySpace.SMEM),    # PReLU alpha
            ],
            out_specs=pl.BlockSpec((Nb, H, L), lambda g: (g, 0, 0)),
            scratch_shapes=[pltpu.VMEM((H + 2, L), jnp.float32)],
        ),
        compiler_params=pltpu.CompilerParams(
            dimension_semantics=("parallel",)),
    )(x, m1, m2, bias, alpha_s)

    # Unpack lanes and return to NCHW.
    if P > 1:
        out = out.reshape(G, H, P, WC).transpose(0, 2, 1, 3).reshape(N, H, WC)
    out = out.reshape(N, H, W, C)
    return jnp.transpose(out, (0, 3, 1, 2))


def _reference(x_nchw, w1, b1, w2, b2, alpha):
    """Pure-JAX f32 reference (NHWC convs) for verification."""
    x = jnp.transpose(x_nchw, (0, 2, 3, 1))

    def conv(inp, w, b):
        p = jnp.pad(inp, ((0, 0), (1, 1), (1, 1), (0, 0)), mode="reflect")
        y = jax.lax.conv_general_dilated(
            p, w, window_strides=(1, 1), padding="VALID",
            dimension_numbers=("NHWC", "HWIO", "NHWC"))
        return y + b

    h = conv(x, w1, b1)
    h = jnp.where(h >= 0, h, alpha * h)
    out = conv(h, w2, b2) * 0.1 + x
    return jnp.transpose(out, (0, 3, 1, 2))


if __name__ == "__main__":
    key = jax.random.PRNGKey(0)
    N, C, H, W = 2, 4, 16, 16

    k_x, k_w1, k_b1, k_w2, k_b2 = jax.random.split(key, 5)
    x = jax.random.normal(k_x, (N, C, H, W), jnp.float32)

    # Deterministic synthetic parameters (PyTorch conv weight OIHW -> HWIO).
    fan_in = C * K * K
    bound = 1.0 / np.sqrt(fan_in)
    w1_oihw = jax.random.uniform(k_w1, (C, C, K, K), jnp.float32, -bound, bound)
    w2_oihw = jax.random.uniform(k_w2, (C, C, K, K), jnp.float32, -bound, bound)
    b1 = jax.random.uniform(k_b1, (C,), jnp.float32, -bound, bound)
    b2 = jax.random.uniform(k_b2, (C,), jnp.float32, -bound, bound)
    w1 = jnp.transpose(w1_oihw, (2, 3, 1, 0))   # HWIO
    w2 = jnp.transpose(w2_oihw, (2, 3, 1, 0))
    alpha = jnp.float32(0.25)                   # nn.PReLU default init

    out = jax.block_until_ready(residual_block(x, w1, b1, w2, b2, alpha))
    ref = jax.block_until_ready(_reference(x, w1, b1, w2, b2, alpha))
    # Tolerance loosened vs. the pure-f32 version because matmul operands are bf16
    # (f32 accumulation); observed error is ~1e-3, structural bugs would be O(1).
    np.testing.assert_allclose(np.asarray(out), np.asarray(ref), rtol=1e-2, atol=1e-2)

    print("KERNEL_OK")
</pallas_src>

<mosaic_0001>
module attributes {stable_mosaic.version = 11 : i64} {
  func.func @_residual_block_kernel(%arg0: i32, %arg1: memref<1x16x128xf32, #tpu.memory_space<vmem>>, %arg2: memref<3x128x128xbf16, #tpu.memory_space<vmem>>, %arg3: memref<3x128x128xbf16, #tpu.memory_space<vmem>>, %arg4: memref<2x128xf32, #tpu.memory_space<vmem>>, %arg5: memref<1x1xf32, #tpu.memory_space<smem>>, %arg6: memref<1x16x128xf32, #tpu.memory_space<vmem>>, %arg7: memref<18x128xf32, #tpu.memory_space<vmem>>) attributes {dimension_semantics = [#tpu.dimension_semantics<parallel>], iteration_bounds = array<i64: 1>, scalar_prefetch = 0 : i64, scratch_operands = 1 : i64, tpu.core_type = #tpu.core_type<tc>, window_params = [{transform_indices = @transform_0, window_bounds = array<i64: 1, 16, 128>}, {pipeline_mode = #tpu.pipeline_mode<synchronous>, transform_indices = @transform_1, window_bounds = array<i64: 3, 128, 128>}, {pipeline_mode = #tpu.pipeline_mode<synchronous>, transform_indices = @transform_2, window_bounds = array<i64: 3, 128, 128>}, {pipeline_mode = #tpu.pipeline_mode<synchronous>, transform_indices = @transform_3, window_bounds = array<i64: 2, 128>}, {transform_indices = @transform_4, window_bounds = array<i64: 1, 1>}, {transform_indices = @transform_5, window_bounds = array<i64: 1, 16, 128>}]} {
    %c0 = arith.constant 0 : index
    %c0_0 = arith.constant 0 : index
    %0 = memref.load %arg5[%c0, %c0_0] : memref<1x1xf32, #tpu.memory_space<smem>>
    %c0_1 = arith.constant 0 : index
    %c0_2 = arith.constant 0 : index
    %1 = vector.load %arg4[%c0_1, %c0_2] : memref<2x128xf32, #tpu.memory_space<vmem>>, vector<1x128xf32>
    %c1 = arith.constant 1 : index
    %c0_3 = arith.constant 0 : index
    %2 = vector.load %arg4[%c1, %c0_3] : memref<2x128xf32, #tpu.memory_space<vmem>>, vector<1x128xf32>
    %c0_4 = arith.constant 0 : index
    %c0_5 = arith.constant 0 : index
    %c0_6 = arith.constant 0 : index
    %3 = vector.load %arg1[%c0_4, %c0_5, %c0_6] : memref<1x16x128xf32, #tpu.memory_space<vmem>>, vector<1x16x128xf32>
    %4 = vector.shape_cast %3 : vector<1x16x128xf32> to vector<16x128xf32>
    %c1_7 = arith.constant 1 : index
    %c0_8 = arith.constant 0 : index
    %5 = vector.load %arg7[%c1_7, %c0_8] : memref<18x128xf32, #tpu.memory_space<vmem>>, vector<16x128xf32>
    tpu.vector_store %arg7[%c1_7, %c0_8], %4 {strides = array<i32>} : memref<18x128xf32, #tpu.memory_space<vmem>>, vector<16x128xf32>,
    %6 = vector.extract_strided_slice %4 {offsets = [1, 0], sizes = [1, 128], strides = [1, 1]} : vector<16x128xf32> to vector<1x128xf32>
    %c0_9 = arith.constant 0 : index
    %c0_10 = arith.constant 0 : index
    %7 = vector.load %arg7[%c0_9, %c0_10] : memref<18x128xf32, #tpu.memory_space<vmem>>, vector<1x128xf32>
    tpu.vector_store %arg7[%c0_9, %c0_10], %6 {strides = array<i32>} : memref<18x128xf32, #tpu.memory_space<vmem>>, vector<1x128xf32>,
    %8 = vector.extract_strided_slice %4 {offsets = [14, 0], sizes = [1, 128], strides = [1, 1]} : vector<16x128xf32> to vector<1x128xf32>
    %c17 = arith.constant 17 : index
    %c0_11 = arith.constant 0 : index
    %9 = vector.load %arg7[%c17, %c0_11] : memref<18x128xf32, #tpu.memory_space<vmem>>, vector<1x128xf32>
    tpu.vector_store %arg7[%c17, %c0_11], %8 {strides = array<i32>} : memref<18x128xf32, #tpu.memory_space<vmem>>, vector<1x128xf32>,
    %c0_12 = arith.constant 0 : index
    %c0_13 = arith.constant 0 : index
    %10 = vector.load %arg7[%c0_12, %c0_13] : memref<18x128xf32, #tpu.memory_space<vmem>>, vector<18x128xf32>
    %11 = arith.truncf %10 : vector<18x128xf32> to vector<18x128xbf16>
    %12 = vector.extract_strided_slice %11 {offsets = [0, 0], sizes = [16, 128], strides = [1, 1]} : vector<18x128xbf16> to vector<16x128xbf16>
    %c0_14 = arith.constant 0 : index
    %c0_15 = arith.constant 0 : index
    %c0_16 = arith.constant 0 : index
    %13 = vector.load %arg2[%c0_14, %c0_15, %c0_16] : memref<3x128x128xbf16, #tpu.memory_space<vmem>>, vector<1x128x128xbf16>
    %14 = vector.shape_cast %13 : vector<1x128x128xbf16> to vector<128x128xbf16>
    %cst = arith.constant dense<0.000000e+00> : vector<16x128xf32>
    %15 = tpu.matmul %12, %14, %cst {dimension_numbers = #tpu.dot_dimension_numbers<[1], [0], [0], [1], [0, 0, 1, 1], [], []>} : vector<16x128xbf16>, vector<128x128xbf16>, vector<16x128xf32> -> vector<16x128xf32>
    %16 = vector.extract_strided_slice %11 {offsets = [1, 0], sizes = [16, 128], strides = [1, 1]} : vector<18x128xbf16> to vector<16x128xbf16>
    %c1_17 = arith.constant 1 : index
    %c0_18 = arith.constant 0 : index
    %c0_19 = arith.constant 0 : index
    %17 = vector.load %arg2[%c1_17, %c0_18, %c0_19] : memref<3x128x128xbf16, #tpu.memory_space<vmem>>, vector<1x128x128xbf16>
    %18 = vector.shape_cast %17 : vector<1x128x128xbf16> to vector<128x128xbf16>
    %cst_20 = arith.constant dense<0.000000e+00> : vector<16x128xf32>
    %19 = tpu.matmul %16, %18, %cst_20 {dimension_numbers = #tpu.dot_dimension_numbers<[1], [0], [0], [1], [0, 0, 1, 1], [], []>} : vector<16x128xbf16>, vector<128x128xbf16>, vector<16x128xf32> -> vector<16x128xf32>
    %20 = arith.addf %15, %19 : vector<16x128xf32>
    %21 = vector.extract_strided_slice %11 {offsets = [2, 0], sizes = [16, 128], strides = [1, 1]} : vector<18x128xbf16> to vector<16x128xbf16>
    %c2 = arith.constant 2 : index
    %c0_21 = arith.constant 0 : index
    %c0_22 = arith.constant 0 : index
    %22 = vector.load %arg2[%c2, %c0_21, %c0_22] : memref<3x128x128xbf16, #tpu.memory_space<vmem>>, vector<1x128x128xbf16>
    %23 = vector.shape_cast %22 : vector<1x128x128xbf16> to vector<128x128xbf16>
    %cst_23 = arith.constant dense<0.000000e+00> : vector<16x128xf32>
    %24 = tpu.matmul %21, %23, %cst_23 {dimension_numbers = #tpu.dot_dimension_numbers<[1], [0], [0], [1], [0, 0, 1, 1], [], []>} : vector<16x128xbf16>, vector<128x128xbf16>, vector<16x128xf32> -> vector<16x128xf32>
    %25 = arith.addf %20, %24 : vector<16x128xf32>
    %26 = vector.broadcast %1 : vector<1x128xf32> to vector<16x128xf32>
    %27 = arith.addf %25, %26 : vector<16x128xf32>
    %cst_24 = arith.constant 0.000000e+00 : f32
    %28 = vector.broadcast %cst_24 : f32 to vector<16x128xf32>
    %29 = arith.cmpf oge, %27, %28 : vector<16x128xf32>
    %30 = vector.broadcast %0 : f32 to vector<16x128xf32>
    %31 = arith.mulf %30, %27 : vector<16x128xf32>
    %32 = arith.select %29, %27, %31 : vector<16x128xi1>, vector<16x128xf32>
    %c1_25 = arith.constant 1 : index
    %c0_26 = arith.constant 0 : index
    %33 = vector.load %arg7[%c1_25, %c0_26] : memref<18x128xf32, #tpu.memory_space<vmem>>, vector<16x128xf32>
    tpu.vector_store %arg7[%c1_25, %c0_26], %32 {strides = array<i32>} : memref<18x128xf32, #tpu.memory_space<vmem>>, vector<16x128xf32>,
    %34 = vector.extract_strided_slice %32 {offsets = [1, 0], sizes = [1, 128], strides = [1, 1]} : vector<16x128xf32> to vector<1x128xf32>
    %c0_27 = arith.constant 0 : index
    %c0_28 = arith.constant 0 : index
    %35 = vector.load %arg7[%c0_27, %c0_28] : memref<18x128xf32, #tpu.memory_space<vmem>>, vector<1x128xf32>
    tpu.vector_store %arg7[%c0_27, %c0_28], %34 {strides = array<i32>} : memref<18x128xf32, #tpu.memory_space<vmem>>, vector<1x128xf32>,
    %36 = vector.extract_strided_slice %32 {offsets = [14, 0], sizes = [1, 128], strides = [1, 1]} : vector<16x128xf32> to vector<1x128xf32>
    %c17_29 = arith.constant 17 : index
    %c0_30 = arith.constant 0 : index
    %37 = vector.load %arg7[%c17_29, %c0_30] : memref<18x128xf32, #tpu.memory_space<vmem>>, vector<1x128xf32>
    tpu.vector_store %arg7[%c17_29, %c0_30], %36 {strides = array<i32>} : memref<18x128xf32, #tpu.memory_space<vmem>>, vector<1x128xf32>,
    %c0_31 = arith.constant 0 : index
    %c0_32 = arith.constant 0 : index
    %38 = vector.load %arg7[%c0_31, %c0_32] : memref<18x128xf32, #tpu.memory_space<vmem>>, vector<18x128xf32>
    %39 = arith.truncf %38 : vector<18x128xf32> to vector<18x128xbf16>
    %40 = vector.extract_strided_slice %39 {offsets = [0, 0], sizes = [16, 128], strides = [1, 1]} : vector<18x128xbf16> to vector<16x128xbf16>
    %c0_33 = arith.constant 0 : index
    %c0_34 = arith.constant 0 : index
    %c0_35 = arith.constant 0 : index
    %41 = vector.load %arg3[%c0_33, %c0_34, %c0_35] : memref<3x128x128xbf16, #tpu.memory_space<vmem>>, vector<1x128x128xbf16>
    %42 = vector.shape_cast %41 : vector<1x128x128xbf16> to vector<128x128xbf16>
    %cst_36 = arith.constant dense<0.000000e+00> : vector<16x128xf32>
    %43 = tpu.matmul %40, %42, %cst_36 {dimension_numbers = #tpu.dot_dimension_numbers<[1], [0], [0], [1], [0, 0, 1, 1], [], []>} : vector<16x128xbf16>, vector<128x128xbf16>, vector<16x128xf32> -> vector<16x128xf32>
    %44 = vector.extract_strided_slice %39 {offsets = [1, 0], sizes = [16, 128], strides = [1, 1]} : vector<18x128xbf16> to vector<16x128xbf16>
    %c1_37 = arith.constant 1 : index
    %c0_38 = arith.constant 0 : index
    %c0_39 = arith.constant 0 : index
    %45 = vector.load %arg3[%c1_37, %c0_38, %c0_39] : memref<3x128x128xbf16, #tpu.memory_space<vmem>>, vector<1x128x128xbf16>
    %46 = vector.shape_cast %45 : vector<1x128x128xbf16> to vector<128x128xbf16>
    %cst_40 = arith.constant dense<0.000000e+00> : vector<16x128xf32>
    %47 = tpu.matmul %44, %46, %cst_40 {dimension_numbers = #tpu.dot_dimension_numbers<[1], [0], [0], [1], [0, 0, 1, 1], [], []>} : vector<16x128xbf16>, vector<128x128xbf16>, vector<16x128xf32> -> vector<16x128xf32>
    %48 = arith.addf %43, %47 : vector<16x128xf32>
    %49 = vector.extract_strided_slice %39 {offsets = [2, 0], sizes = [16, 128], strides = [1, 1]} : vector<18x128xbf16> to vector<16x128xbf16>
    %c2_41 = arith.constant 2 : index
    %c0_42 = arith.constant 0 : index
    %c0_43 = arith.constant 0 : index
    %50 = vector.load %arg3[%c2_41, %c0_42, %c0_43] : memref<3x128x128xbf16, #tpu.memory_space<vmem>>, vector<1x128x128xbf16>
    %51 = vector.shape_cast %50 : vector<1x128x128xbf16> to vector<128x128xbf16>
    %cst_44 = arith.constant dense<0.000000e+00> : vector<16x128xf32>
    %52 = tpu.matmul %49, %51, %cst_44 {dimension_numbers = #tpu.dot_dimension_numbers<[1], [0], [0], [1], [0, 0, 1, 1], [], []>} : vector<16x128xbf16>, vector<128x128xbf16>, vector<16x128xf32> -> vector<16x128xf32>
    %53 = arith.addf %48, %52 : vector<16x128xf32>
    %54 = vector.broadcast %2 : vector<1x128xf32> to vector<16x128xf32>
    %55 = arith.addf %53, %54 : vector<16x128xf32>
    %c0_45 = arith.constant 0 : index
    %c0_46 = arith.constant 0 : index
    %c0_47 = arith.constant 0 : index
    %56 = vector.load %arg1[%c0_45, %c0_46, %c0_47] : memref<1x16x128xf32, #tpu.memory_space<vmem>>, vector<1x16x128xf32>
    %57 = vector.shape_cast %56 : vector<1x16x128xf32> to vector<16x128xf32>
    %58 = arith.addf %55, %57 : vector<16x128xf32>
    %c0_48 = arith.constant 0 : index
    %c0_49 = arith.constant 0 : index
    %c0_50 = arith.constant 0 : index
    %59 = vector.load %arg6[%c0_48, %c0_49, %c0_50] : memref<1x16x128xf32, #tpu.memory_space<vmem>>, vector<1x16x128xf32>
    %60 = vector.shape_cast %59 : vector<1x16x128xf32> to vector<16x128xf32>
    %61 = vector.shape_cast %58 : vector<16x128xf32> to vector<1x16x128xf32>
    tpu.vector_store %arg6[%c0_48, %c0_49, %c0_50], %61 {strides = array<i32>} : memref<1x16x128xf32, #tpu.memory_space<vmem>>, vector<1x16x128xf32>,
    return
  }
  func.func @transform_0(%arg0: i32) -> (i32, i32, i32) {
    %c0_i32 = arith.constant 0 : i32
    %c0_i32_0 = arith.constant 0 : i32
    %c0_i32_1 = arith.constant 0 : i32
    return %arg0, %c0_i32, %c0_i32_0 : i32, i32, i32
  }
  func.func @transform_1(%arg0: i32) -> (i32, i32, i32) {
    %c0_i32 = arith.constant 0 : i32
    %c0_i32_0 = arith.constant 0 : i32
    %c0_i32_1 = arith.constant 0 : i32
    %c0_i32_2 = arith.constant 0 : i32
    return %c0_i32, %c0_i32_0, %c0_i32_1 : i32, i32, i32
  }
  func.func @transform_2(%arg0: i32) -> (i32, i32, i32) {
    %c0_i32 = arith.constant 0 : i32
    %c0_i32_0 = arith.constant 0 : i32
    %c0_i32_1 = arith.constant 0 : i32
    %c0_i32_2 = arith.constant 0 : i32
    return %c0_i32, %c0_i32_0, %c0_i32_1 : i32, i32, i32
  }
  func.func @transform_3(%arg0: i32) -> (i32, i32) {
    %c0_i32 = arith.constant 0 : i32
    %c0_i32_0 = arith.constant 0 : i32
    %c0_i32_1 = arith.constant 0 : i32
    return %c0_i32, %c0_i32_0 : i32, i32
  }
  func.func @transform_4(%arg0: i32) -> (i32, i32) {
    %c0_i32 = arith.constant 0 : i32
    %c0_i32_0 = arith.constant 0 : i32
    %c0_i32_1 = arith.constant 0 : i32
    return %c0_i32, %c0_i32_0 : i32, i32
  }
  func.func @transform_5(%arg0: i32) -> (i32, i32, i32) {
    %c0_i32 = arith.constant 0 : i32
    %c0_i32_0 = arith.constant 0 : i32
    %c0_i32_1 = arith.constant 0 : i32
    return %arg0, %c0_i32, %c0_i32_0 : i32, i32, i32
  }
}

</mosaic_0001>

<llo_original>
// kernel: tpu_custom_call.1
$region0: #{tpu_custom_call.1}
  #allocation0 [shape = 'u32[]', space=smem, size = 0x4, offset = 0x4, fixed_abs, tag = 'smem constant byte address 0x4 - core index']
  #allocation1 [shape = 'u32[144,128]{1,0:T(1,128)}', space=vmem, size = 0x12000, scoped, tag = 'internal scratch']
  #allocation2 [shape = 'f32[18,128]{1,0:T(8,128)}', space=vmem, size = 0x3000, scoped, tag = 'scratch operand']
  #allocation3 [shape = 'f32[1,1]{1,0:T(1,128)S(6)}', space=smem, size = 0x200, scoped, tag = 'scoped memory for tpu_custom_call.1']
  %s0 = inlined_call_operand.hbm [shape: f32[1,16,128], index: 0, kind: input, shape index: {}]
  %s1 = inlined_call_operand.hbm [shape: bf16[3,128,128], index: 1, kind: input, shape index: {}]
  %s2 = inlined_call_operand.hbm [shape: bf16[3,128,128], index: 2, kind: input, shape index: {}]
  %s3 = inlined_call_operand.vmem [shape: f32[2,128], index: 3, kind: input, shape index: {}]
  %s4 = inlined_call_operand.<no memory space> [shape: f32[1,1], index: 4, kind: input, shape index: {}]
  %s5 = inlined_call_operand.hbm [shape: f32[1,16,128], index: 5, kind: output, shape index: {}]
  %s6 = sld [smem:[#allocation0]]
  $region42: #{tpu_custom_call.1} parent=0
    _
  %s8 = ssub.s32 1, %s6
  %s9 = scalar_select 0, %s8, %s6
  %10 = sst [smem:[#allocation3]] %s4
  $region1: #{tpu_custom_call.1} parent=0
    #allocation4 [shape = 'u8[8192]{0}', space=vmem, size = 0x2000, scoped, tag = 'input window, operand 0, single buffered']
    #allocation5 [shape = 's32[1]{0}', space=sflag, size = 0x4, scoped, tag = 'scoped memory for tpu_custom_call.1']
    #allocation6 [shape = 's32[1]{0}', space=sflag, size = 0x4, scoped, tag = 'scoped memory for tpu_custom_call.1']
    #allocation7 [shape = 'u8[98304]{0}', space=vmem, size = 0x18000, scoped, tag = 'input window, operand 1, single buffered']
    #allocation8 [shape = 's32[1]{0}', space=sflag, size = 0x4, scoped, tag = 'scoped memory for tpu_custom_call.1']
    #allocation9 [shape = 'u8[98304]{0}', space=vmem, size = 0x18000, scoped, tag = 'input window, operand 2, single buffered']
    #allocation10 [shape = 'u8[8192]{0}', space=vmem, size = 0x2000, scoped, tag = 'output window, operand 0, single buffered']
    %11 = vsyncpa [#allocation5], 0
    %12 = vsyncpa [#allocation8], 0
    %13 = vsyncpa [#allocation6], 0
    // Predicated region
    $region2: #{tpu_custom_call.1} parent=1 // pred_check
      _
    $region3: #{tpu_custom_call.1} parent=1 // pred_check_branch
      %15 = sbr.rel (0) target = $region5
    $region4: #{tpu_custom_call.1} parent=1 // pred_region
      %s17 = ssub.s32 256, 256
      %18 = vsyncadd [#allocation5], %s17
      %s19 = sshll.u32 [#allocation4], 4
      %s20 = int_to_ptr.vmem [resolvable:$true] %s19
      %25 = dma.hbm_to_vmem [thread:$0]  %s0, 256, %s20, [#allocation5], 128, 128, 8
    $region5: #{tpu_custom_call.1} parent=1 // pred_fallthru
      _
    // Predicated region
    $region6: #{tpu_custom_call.1} parent=1 // pred_check
      _
    $region7: #{tpu_custom_call.1} parent=1 // pred_check_branch
      %27 = sbr.rel (0) target = $region9
    $region8: #{tpu_custom_call.1} parent=1 // pred_region
      %s29 = ssub.s32 3072, 3072
      %30 = vsyncadd [#allocation8], %s29
      %s31 = sshll.u32 [#allocation7], 4
      %s32 = int_to_ptr.vmem [resolvable:$true] %s31
      %37 = dma.hbm_to_vmem [thread:$0]  %s1, 3072, %s32, [#allocation8], 64, 64, 4
    $region9: #{tpu_custom_call.1} parent=1 // pred_fallthru
      _
    // Predicated region
    $region10: #{tpu_custom_call.1} parent=1 // pred_check
      _
    $region11: #{tpu_custom_call.1} parent=1 // pred_check_branch
      %39 = sbr.rel (0) target = $region13
    $region12: #{tpu_custom_call.1} parent=1 // pred_region
      %s41 = ssub.s32 3072, 3072
      %42 = vsyncadd [#allocation8], %s41
      %s43 = sshll.u32 [#allocation9], 4
      %s44 = int_to_ptr.vmem [resolvable:$true] %s43
      %49 = dma.hbm_to_vmem [thread:$0]  %s2, 3072, %s44, [#allocation8], 64, 64, 4
    $region13: #{tpu_custom_call.1} parent=1 // pred_fallthru
      _
    // Predicated region
    $region14: #{tpu_custom_call.1} parent=1 // pred_check
      _
    $region15: #{tpu_custom_call.1} parent=1 // pred_check_branch
      %51 = sbr.rel (0) target = $region17
    $region16: #{tpu_custom_call.1} parent=1 // pred_region
      _
    $region17: #{tpu_custom_call.1} parent=1 // pred_fallthru
      _
    // Predicated region
    $region18: #{tpu_custom_call.1} parent=1 // pred_check
      _
    $region19: #{tpu_custom_call.1} parent=1 // pred_check_branch
      %53 = sbr.rel (0) target = $region21
    $region20: #{tpu_custom_call.1} parent=1 // pred_region
      _
    $region21: #{tpu_custom_call.1} parent=1 // pred_fallthru
      _
    // Predicated region
    $region22: #{tpu_custom_call.1} parent=1 // pred_check
      _
    $region23: #{tpu_custom_call.1} parent=1 // pred_check_branch
      %55 = sbr.rel (0) target = $region25
    $region24: #{tpu_custom_call.1} parent=1 // pred_region
      %56 = dma.done [#allocation5], 256
    $region25: #{tpu_custom_call.1} parent=1 // pred_fallthru
      _
    // Predicated region
    $region26: #{tpu_custom_call.1} parent=1 // pred_check
      _
    $region27: #{tpu_custom_call.1} parent=1 // pred_check_branch
      %58 = sbr.rel (0) target = $region29
    $region28: #{tpu_custom_call.1} parent=1 // pred_region
      %59 = dma.done [#allocation8], 3072
    $region29: #{tpu_custom_call.1} parent=1 // pred_fallthru
      _
    // Predicated region
    $region30: #{tpu_custom_call.1} parent=1 // pred_check
      _
    $region31: #{tpu_custom_call.1} parent=1 // pred_check_branch
      %61 = sbr.rel (0) target = $region33
    $region32: #{tpu_custom_call.1} parent=1 // pred_region
      %62 = dma.done [#allocation8], 3072
    $region33: #{tpu_custom_call.1} parent=1 // pred_fallthru
      _
    %s64 = sld [smem:[#allocation3]]
    %v65 = vld [vmem:[%s3] sm:$0x1]
    %v66 = vld [vmem:[%s3 + $0x1] sm:$0x1]
    %v67 = vld [vmem:[#allocation4] sm:$0xff]
    %v68 = vld [vmem:[#allocation4 + $0x8] sm:$0xff]
    %69 = vst [vmem:[#allocation2 + $0x1] sm:$0xff] %v67
    %70 = vst [vmem:[#allocation2 + $0x9] sm:$0xff] %v68
    %71 = vst [vmem:[#allocation2 - $0x1] sm:$0x2] %v67
    %72 = vst [vmem:[#allocation2 + $0xb] sm:$0x40] %v68
    %v73 = vld [vmem:[#allocation2] sm:$0xff]
    %v74 = vld [vmem:[#allocation2 + $0x8] sm:$0xff]
    %v75 = vld [vmem:[#allocation2 + $0x10] sm:$0x3]
    %v76 = vpack.c.bf16 %v74, %v73
    %v77 = vpack.c.bf16 %v75, %v75
    %v78 = vld [vmem:[#allocation7] sm:$0xf]
    %v79 = vld [vmem:[#allocation7 + $0x4] sm:$0xf]
    %v80 = vld [vmem:[#allocation7 + $0x8] sm:$0xf]
    %v81 = vld [vmem:[#allocation7 + $0xc] sm:$0xf]
    %v82 = vld [vmem:[#allocation7 + $0x10] sm:$0xf]
    %v83 = vld [vmem:[#allocation7 + $0x14] sm:$0xf]
    %v84 = vld [vmem:[#allocation7 + $0x18] sm:$0xf]
    %v85 = vld [vmem:[#allocation7 + $0x1c] sm:$0xf]
    %v86 = vld [vmem:[#allocation7 + $0x20] sm:$0xf]
    %v87 = vld [vmem:[#allocation7 + $0x24] sm:$0xf]
    %v88 = vld [vmem:[#allocation7 + $0x28] sm:$0xf]
    %v89 = vld [vmem:[#allocation7 + $0x2c] sm:$0xf]
    %v90 = vld [vmem:[#allocation7 + $0x30] sm:$0xf]
    %v91 = vld [vmem:[#allocation7 + $0x34] sm:$0xf]
    %v92 = vld [vmem:[#allocation7 + $0x38] sm:$0xf]
    %v93 = vld [vmem:[#allocation7 + $0x3c] sm:$0xf]
    %s94 = scalar_lea.vmem [#allocation7], 64
    %v95 = vld [vmem:[%s94] sm:$0xf]
    %v96 = vld [vmem:[%s94 + $0x4] sm:$0xf]
    %v97 = vld [vmem:[%s94 + $0x8] sm:$0xf]
    %v98 = vld [vmem:[%s94 + $0xc] sm:$0xf]
    %v99 = vld [vmem:[%s94 + $0x10] sm:$0xf]
    %v100 = vld [vmem:[%s94 + $0x14] sm:$0xf]
    %v101 = vld [vmem:[%s94 + $0x18] sm:$0xf]
    %v102 = vld [vmem:[%s94 + $0x1c] sm:$0xf]
    %v103 = vld [vmem:[%s94 + $0x20] sm:$0xf]
    %v104 = vld [vmem:[%s94 + $0x24] sm:$0xf]
    %v105 = vld [vmem:[%s94 + $0x28] sm:$0xf]
    %v106 = vld [vmem:[%s94 + $0x2c] sm:$0xf]
    %v107 = vld [vmem:[%s94 + $0x30] sm:$0xf]
    %v108 = vld [vmem:[%s94 + $0x34] sm:$0xf]
    %v109 = vld [vmem:[%s94 + $0x38] sm:$0xf]
    %v110 = vld [vmem:[%s94 + $0x3c] sm:$0xf]
    %vm111 = vsmask.f32 7424
    %v113 = vshrl.u32 %v76, 16
    %v115 = vshll.u32 %v76, 16
    %v117 = vrot.slane %v115, 1
    %v118 = vor.u32 %v113, %v117
    %v120 = vshll.u32 %v77, 16
    %v122 = vrot.slane %v120, 1
    %v123 = vsel %vm111, %v118, %v122
    %v141 = vunpack.c.l.b16 %v95
    %v142 = vunpack.c.l.b16 %v96
    %v143 = vunpack.c.l.b16 %v97
    %v144 = vunpack.c.l.b16 %v98
    %v145 = vunpack.c.l.b16 %v99
    %v146 = vunpack.c.l.b16 %v100
    %v147 = vunpack.c.l.b16 %v101
    %v148 = vunpack.c.l.b16 %v102
    %v149 = vunpack.c.l.b16 %v103
    %v150 = vunpack.c.l.b16 %v104
    %v151 = vunpack.c.l.b16 %v105
    %v152 = vunpack.c.l.b16 %v106
    %v153 = vunpack.c.l.b16 %v107
    %v154 = vunpack.c.l.b16 %v108
    %v155 = vunpack.c.l.b16 %v109
    %v156 = vunpack.c.l.b16 %v110
    %v157 = vpack.c.b16 %v142, %v141
    %v158 = vpack.c.b16 %v144, %v143
    %v159 = vpack.c.b16 %v146, %v145
    %v160 = vpack.c.b16 %v148, %v147
    %v161 = vpack.c.b16 %v150, %v149
    %v162 = vpack.c.b16 %v152, %v151
    %v163 = vpack.c.b16 %v154, %v153
    %v164 = vpack.c.b16 %v156, %v155
    %173 = vmatprep.subr.bf16.mxu0 0
    %174 = vmatpush1.bf16.msra.mxu0 %v157
    %175 = vmatprep.subr.bf16.mxu0 0
    %176 = vmatpush1.bf16.msra.mxu0 %v158
    %177 = vmatprep.subr.bf16.mxu0 0
    %178 = vmatpush1.bf16.msra.mxu0 %v159
    %179 = vmatprep.subr.bf16.mxu0 0
    %180 = vmatpush1.bf16.msra.mxu0 %v160
    %181 = vmatprep.subr.bf16.mxu0 0
    %182 = vmatpush1.bf16.msra.mxu0 %v161
    %183 = vmatprep.subr.bf16.mxu0 0
    %184 = vmatpush1.bf16.msra.mxu0 %v162
    %185 = vmatprep.subr.bf16.mxu0 0
    %186 = vmatpush1.bf16.msra.mxu0 %v163
    %187 = vmatprep.subr.bf16.mxu0 0
    %188 = vmatpush1.bf16.msra.mxu0 %v164
    %189 = vmatprep.subr.bf16.mxu0 0
    %190 = vmatpush1.bf16.msra.mxu0 0
    %191 = vmatprep.subr.bf16.mxu0 0
    %192 = vmatpush1.bf16.msra.mxu0 0
    %193 = vmatprep.subr.bf16.mxu0 0
    %194 = vmatpush1.bf16.msra.mxu0 0
    %195 = vmatprep.subr.bf16.mxu0 0
    %196 = vmatpush1.bf16.msra.mxu0 0
    %197 = vmatprep.subr.bf16.mxu0 0
    %198 = vmatpush1.bf16.msra.mxu0 0
    %199 = vmatprep.subr.bf16.mxu0 0
    %200 = vmatpush1.bf16.msra.mxu0 0
    %201 = vmatprep.subr.bf16.mxu0 0
    %202 = vmatpush1.bf16.msra.mxu0 0
    %203 = vmatprep.subr.bf16.mxu0 0
    %204 = vmatpush1.bf16.msra.mxu0 0
    %205 = vmatprep.mubr.bf16.mxu0 0
    %206 = vmatmul.mubr.bf16.gmra.mrb[0].mxu0 %v123
    %v207 = vpop.f32.mrb[0].mxu0
    %v208 = vadd.f32 0.0, %v207
    %v209 = vpop.f32.mrb[0].mxu0
    %v210 = vpop.f32.mrb[0].mxu0
    %v211 = vadd.f32 0.0, %v210
    %v212 = vpop.f32.mrb[0].mxu0
    %213 = vdwg.mxu0
    %v230 = vunpack.c.l.b16 %v78
    %v231 = vunpack.c.l.b16 %v79
    %v232 = vunpack.c.l.b16 %v80
    %v233 = vunpack.c.l.b16 %v81
    %v234 = vunpack.c.l.b16 %v82
    %v235 = vunpack.c.l.b16 %v83
    %v236 = vunpack.c.l.b16 %v84
    %v237 = vunpack.c.l.b16 %v85
    %v238 = vunpack.c.l.b16 %v86
    %v239 = vunpack.c.l.b16 %v87
    %v240 = vunpack.c.l.b16 %v88
    %v241 = vunpack.c.l.b16 %v89
    %v242 = vunpack.c.l.b16 %v90
    %v243 = vunpack.c.l.b16 %v91
    %v244 = vunpack.c.l.b16 %v92
    %v245 = vunpack.c.l.b16 %v93
    %v246 = vpack.c.b16 %v231, %v230
    %v247 = vpack.c.b16 %v233, %v232
    %v248 = vpack.c.b16 %v235, %v234
    %v249 = vpack.c.b16 %v237, %v236
    %v250 = vpack.c.b16 %v239, %v238
    %v251 = vpack.c.b16 %v241, %v240
    %v252 = vpack.c.b16 %v243, %v242
    %v253 = vpack.c.b16 %v245, %v244
    %262 = vmatprep.subr.bf16.mxu0 0
    %263 = vmatpush1.bf16.msra.mxu0 %v246
    %264 = vmatprep.subr.bf16.mxu0 0
    %265 = vmatpush1.bf16.msra.mxu0 %v247
    %266 = vmatprep.subr.bf16.mxu0 0
    %267 = vmatpush1.bf16.msra.mxu0 %v248
    %268 = vmatprep.subr.bf16.mxu0 0
    %269 = vmatpush1.bf16.msra.mxu0 %v249
    %270 = vmatprep.subr.bf16.mxu0 0
    %271 = vmatpush1.bf16.msra.mxu0 %v250
    %272 = vmatprep.subr.bf16.mxu0 0
    %273 = vmatpush1.bf16.msra.mxu0 %v251
    %274 = vmatprep.subr.bf16.mxu0 0
    %275 = vmatpush1.bf16.msra.mxu0 %v252
    %276 = vmatprep.subr.bf16.mxu0 0
    %277 = vmatpush1.bf16.msra.mxu0 %v253
    %278 = vmatprep.subr.bf16.mxu0 0
    %279 = vmatpush1.bf16.msra.mxu0 0
    %280 = vmatprep.subr.bf16.mxu0 0
    %281 = vmatpush1.bf16.msra.mxu0 0
    %282 = vmatprep.subr.bf16.mxu0 0
    %283 = vmatpush1.bf16.msra.mxu0 0
    %284 = vmatprep.subr.bf16.mxu0 0
    %285 = vmatpush1.bf16.msra.mxu0 0
    %286 = vmatprep.subr.bf16.mxu0 0
    %287 = vmatpush1.bf16.msra.mxu0 0
    %288 = vmatprep.subr.bf16.mxu0 0
    %289 = vmatpush1.bf16.msra.mxu0 0
    %290 = vmatprep.subr.bf16.mxu0 0
    %291 = vmatpush1.bf16.msra.mxu0 0
    %292 = vmatprep.subr.bf16.mxu0 0
    %293 = vmatpush1.bf16.msra.mxu0 0
    %294 = vmatprep.mubr.bf16.mxu0 0
    %295 = vmatmul.mubr.bf16.gmra.mrb[0].mxu0 %v76
    %v296 = vpop.f32.mrb[0].mxu0
    %v297 = vadd.f32 %v208, %v296
    %v298 = vpop.f32.mrb[0].mxu0
    %v299 = vpop.f32.mrb[0].mxu0
    %v300 = vadd.f32 %v211, %v299
    %v301 = vpop.f32.mrb[0].mxu0
    %302 = vdwg.mxu0
    %s303 = scalar_lea.vmem [#allocation7], 128
    %v304 = vld [vmem:[%s303] sm:$0xf]
    %v305 = vld [vmem:[%s303 + $0x4] sm:$0xf]
    %v306 = vld [vmem:[%s303 + $0x8] sm:$0xf]
    %v307 = vld [vmem:[%s303 + $0xc] sm:$0xf]
    %v308 = vld [vmem:[%s303 + $0x10] sm:$0xf]
    %v309 = vld [vmem:[%s303 + $0x14] sm:$0xf]
    %v310 = vld [vmem:[%s303 + $0x18] sm:$0xf]
    %v311 = vld [vmem:[%s303 + $0x1c] sm:$0xf]
    %v312 = vld [vmem:[%s303 + $0x20] sm:$0xf]
    %v313 = vld [vmem:[%s303 + $0x24] sm:$0xf]
    %v314 = vld [vmem:[%s303 + $0x28] sm:$0xf]
    %v315 = vld [vmem:[%s303 + $0x2c] sm:$0xf]
    %v316 = vld [vmem:[%s303 + $0x30] sm:$0xf]
    %v317 = vld [vmem:[%s303 + $0x34] sm:$0xf]
    %v318 = vld [vmem:[%s303 + $0x38] sm:$0xf]
    %v319 = vld [vmem:[%s303 + $0x3c] sm:$0xf]
    %vm322 = vcmask 1046528
    %v323 = vrot.slane %v76, 1
    %v324 = vrot.slane %v77, 1
    %v325 = vsel %vm322, %v323, %v324
    %v343 = vunpack.c.l.b16 %v304
    %v344 = vunpack.c.l.b16 %v305
    %v345 = vunpack.c.l.b16 %v306
    %v346 = vunpack.c.l.b16 %v307
    %v347 = vunpack.c.l.b16 %v308
    %v348 = vunpack.c.l.b16 %v309
    %v349 = vunpack.c.l.b16 %v310
    %v350 = vunpack.c.l.b16 %v311
    %v351 = vunpack.c.l.b16 %v312
    %v352 = vunpack.c.l.b16 %v313
    %v353 = vunpack.c.l.b16 %v314
    %v354 = vunpack.c.l.b16 %v315
    %v355 = vunpack.c.l.b16 %v316
    %v356 = vunpack.c.l.b16 %v317
    %v357 = vunpack.c.l.b16 %v318
    %v358 = vunpack.c.l.b16 %v319
    %v359 = vpack.c.b16 %v344, %v343
    %v360 = vpack.c.b16 %v346, %v345
    %v361 = vpack.c.b16 %v348, %v347
    %v362 = vpack.c.b16 %v350, %v349
    %v363 = vpack.c.b16 %v352, %v351
    %v364 = vpack.c.b16 %v354, %v353
    %v365 = vpack.c.b16 %v356, %v355
    %v366 = vpack.c.b16 %v358, %v357
    %375 = vmatprep.subr.bf16.mxu0 0
    %376 = vmatpush1.bf16.msra.mxu0 %v359
    %377 = vmatprep.subr.bf16.mxu0 0
    %378 = vmatpush1.bf16.msra.mxu0 %v360
    %379 = vmatprep.subr.bf16.mxu0 0
    %380 = vmatpush1.bf16.msra.mxu0 %v361
    %381 = vmatprep.subr.bf16.mxu0 0
    %382 = vmatpush1.bf16.msra.mxu0 %v362
    %383 = vmatprep.subr.bf16.mxu0 0
    %384 = vmatpush1.bf16.msra.mxu0 %v363
    %385 = vmatprep.subr.bf16.mxu0 0
    %386 = vmatpush1.bf16.msra.mxu0 %v364
    %387 = vmatprep.subr.bf16.mxu0 0
    %388 = vmatpush1.bf16.msra.mxu0 %v365
    %389 = vmatprep.subr.bf16.mxu0 0
    %390 = vmatpush1.bf16.msra.mxu0 %v366
    %391 = vmatprep.subr.bf16.mxu0 0
    %392 = vmatpush1.bf16.msra.mxu0 0
    %393 = vmatprep.subr.bf16.mxu0 0
    %394 = vmatpush1.bf16.msra.mxu0 0
    %395 = vmatprep.subr.bf16.mxu0 0
    %396 = vmatpush1.bf16.msra.mxu0 0
    %397 = vmatprep.subr.bf16.mxu0 0
    %398 = vmatpush1.bf16.msra.mxu0 0
    %399 = vmatprep.subr.bf16.mxu0 0
    %400 = vmatpush1.bf16.msra.mxu0 0
    %401 = vmatprep.subr.bf16.mxu0 0
    %402 = vmatpush1.bf16.msra.mxu0 0
    %403 = vmatprep.subr.bf16.mxu0 0
    %404 = vmatpush1.bf16.msra.mxu0 0
    %405 = vmatprep.subr.bf16.mxu0 0
    %406 = vmatpush1.bf16.msra.mxu0 0
    %407 = vmatprep.mubr.bf16.mxu0 0
    %408 = vmatmul.mubr.bf16.gmra.mrb[0].mxu0 %v325
    %v409 = vpop.f32.mrb[0].mxu0
    %v410 = vadd.f32 0.0, %v409
    %v411 = vpop.f32.mrb[0].mxu0
    %v412 = vpop.f32.mrb[0].mxu0
    %v413 = vadd.f32 0.0, %v412
    %v414 = vpop.f32.mrb[0].mxu0
    %415 = vdwg.mxu0
    %v416 = vadd.f32 %v297, %v410
    %v417 = vadd.f32 %v300, %v413
    %v418 = vlaneseq
    %v419 = vshrl.u32 %v418, 7
    %v420 = vsub.s32 0, %v419
    %v421 = vrot.slane %v65, %v420
    %v422 = vadd.f32 %v416, %v421
    %v423 = vadd.f32 %v417, %v421
    %vm424 = vcmp.ge.f32.partialorder %v422, 0.0
    %vm425 = vcmp.ge.f32.partialorder %v423, 0.0
    %v426 = vstv %s64
    %v427 = vmul.f32 %v426, %v422
    %v428 = vmul.f32 %v426, %v423
    %v429 = vsel %vm424, %v422, %v427
    %v430 = vsel %vm425, %v423, %v428
    %431 = vst [vmem:[#allocation2 + $0x1] sm:$0xff] %v429
    %432 = vst [vmem:[#allocation2 + $0x9] sm:$0xff] %v430
    %433 = vst [vmem:[#allocation2 - $0x1] sm:$0x2] %v429
    %434 = vst [vmem:[#allocation2 + $0xb] sm:$0x40] %v430
    %v435 = vld [vmem:[#allocation2] sm:$0xff]
    %v436 = vld [vmem:[#allocation2 + $0x8] sm:$0xff]
    %v437 = vld [vmem:[#allocation2 + $0x10] sm:$0x3]
    %v438 = vpack.c.bf16 %v436, %v435
    %v439 = vpack.c.bf16 %v437, %v437
    %v440 = vld [vmem:[#allocation9] sm:$0xf]
    %v441 = vld [vmem:[#allocation9 + $0x4] sm:$0xf]
    %v442 = vld [vmem:[#allocation9 + $0x8] sm:$0xf]
    %v443 = vld [vmem:[#allocation9 + $0xc] sm:$0xf]
    %v444 = vld [vmem:[#allocation9 + $0x10] sm:$0xf]
    %v445 = vld [vmem:[#allocation9 + $0x14] sm:$0xf]
    %v446 = vld [vmem:[#allocation9 + $0x18] sm:$0xf]
    %v447 = vld [vmem:[#allocation9 + $0x1c] sm:$0xf]
    %v448 = vld [vmem:[#allocation9 + $0x20] sm:$0xf]
    %v449 = vld [vmem:[#allocation9 + $0x24] sm:$0xf]
    %v450 = vld [vmem:[#allocation9 + $0x28] sm:$0xf]
    %v451 = vld [vmem:[#allocation9 + $0x2c] sm:$0xf]
    %v452 = vld [vmem:[#allocation9 + $0x30] sm:$0xf]
    %v453 = vld [vmem:[#allocation9 + $0x34] sm:$0xf]
    %v454 = vld [vmem:[#allocation9 + $0x38] sm:$0xf]
    %v455 = vld [vmem:[#allocation9 + $0x3c] sm:$0xf]
    %s456 = scalar_lea.vmem [#allocation9], 64
    %v457 = vld [vmem:[%s456] sm:$0xf]
    %v458 = vld [vmem:[%s456 + $0x4] sm:$0xf]
    %v459 = vld [vmem:[%s456 + $0x8] sm:$0xf]
    %v460 = vld [vmem:[%s456 + $0xc] sm:$0xf]
    %v461 = vld [vmem:[%s456 + $0x10] sm:$0xf]
    %v462 = vld [vmem:[%s456 + $0x14] sm:$0xf]
    %v463 = vld [vmem:[%s456 + $0x18] sm:$0xf]
    %v464 = vld [vmem:[%s456 + $0x1c] sm:$0xf]
    %v465 = vld [vmem:[%s456 + $0x20] sm:$0xf]
    %v466 = vld [vmem:[%s456 + $0x24] sm:$0xf]
    %v467 = vld [vmem:[%s456 + $0x28] sm:$0xf]
    %v468 = vld [vmem:[%s456 + $0x2c] sm:$0xf]
    %v469 = vld [vmem:[%s456 + $0x30] sm:$0xf]
    %v470 = vld [vmem:[%s456 + $0x34] sm:$0xf]
    %v471 = vld [vmem:[%s456 + $0x38] sm:$0xf]
    %v472 = vld [vmem:[%s456 + $0x3c] sm:$0xf]
    %v474 = vshrl.u32 %v438, 16
    %v476 = vshll.u32 %v438, 16
    %v478 = vrot.slane %v476, 1
    %v479 = vor.u32 %v474, %v478
    %v481 = vshll.u32 %v439, 16
    %v483 = vrot.slane %v481, 1
    %v484 = vsel %vm111, %v479, %v483
    %v502 = vunpack.c.l.b16 %v457
    %v503 = vunpack.c.l.b16 %v458
    %v504 = vunpack.c.l.b16 %v459
    %v505 = vunpack.c.l.b16 %v460
    %v506 = vunpack.c.l.b16 %v461
    %v507 = vunpack.c.l.b16 %v462
    %v508 = vunpack.c.l.b16 %v463
    %v509 = vunpack.c.l.b16 %v464
    %v510 = vunpack.c.l.b16 %v465
    %v511 = vunpack.c.l.b16 %v466
    %v512 = vunpack.c.l.b16 %v467
    %v513 = vunpack.c.l.b16 %v468
    %v514 = vunpack.c.l.b16 %v469
    %v515 = vunpack.c.l.b16 %v470
    %v516 = vunpack.c.l.b16 %v471
    %v517 = vunpack.c.l.b16 %v472
    %v518 = vpack.c.b16 %v503, %v502
    %v519 = vpack.c.b16 %v505, %v504
    %v520 = vpack.c.b16 %v507, %v506
    %v521 = vpack.c.b16 %v509, %v508
    %v522 = vpack.c.b16 %v511, %v510
    %v523 = vpack.c.b16 %v513, %v512
    %v524 = vpack.c.b16 %v515, %v514
    %v525 = vpack.c.b16 %v517, %v516
    %534 = vmatprep.subr.bf16.mxu0 0
    %535 = vmatpush1.bf16.msra.mxu0 %v518
    %536 = vmatprep.subr.bf16.mxu0 0
    %537 = vmatpush1.bf16.msra.mxu0 %v519
    %538 = vmatprep.subr.bf16.mxu0 0
    %539 = vmatpush1.bf16.msra.mxu0 %v520
    %540 = vmatprep.subr.bf16.mxu0 0
    %541 = vmatpush1.bf16.msra.mxu0 %v521
    %542 = vmatprep.subr.bf16.mxu0 0
    %543 = vmatpush1.bf16.msra.mxu0 %v522
    %544 = vmatprep.subr.bf16.mxu0 0
    %545 = vmatpush1.bf16.msra.mxu0 %v523
    %546 = vmatprep.subr.bf16.mxu0 0
    %547 = vmatpush1.bf16.msra.mxu0 %v524
    %548 = vmatprep.subr.bf16.mxu0 0
    %549 = vmatpush1.bf16.msra.mxu0 %v525
    %550 = vmatprep.subr.bf16.mxu0 0
    %551 = vmatpush1.bf16.msra.mxu0 0
    %552 = vmatprep.subr.bf16.mxu0 0
    %553 = vmatpush1.bf16.msra.mxu0 0
    %554 = vmatprep.subr.bf16.mxu0 0
    %555 = vmatpush1.bf16.msra.mxu0 0
    %556 = vmatprep.subr.bf16.mxu0 0
    %557 = vmatpush1.bf16.msra.mxu0 0
    %558 = vmatprep.subr.bf16.mxu0 0
    %559 = vmatpush1.bf16.msra.mxu0 0
    %560 = vmatprep.subr.bf16.mxu0 0
    %561 = vmatpush1.bf16.msra.mxu0 0
    %562 = vmatprep.subr.bf16.mxu0 0
    %563 = vmatpush1.bf16.msra.mxu0 0
    %564 = vmatprep.subr.bf16.mxu0 0
    %565 = vmatpush1.bf16.msra.mxu0 0
    %566 = vmatprep.mubr.bf16.mxu0 0
    %567 = vmatmul.mubr.bf16.gmra.mrb[0].mxu0 %v484
    %v568 = vpop.f32.mrb[0].mxu0
    %v569 = vadd.f32 0.0, %v568
    %v570 = vpop.f32.mrb[0].mxu0
    %v571 = vpop.f32.mrb[0].mxu0
    %v572 = vadd.f32 0.0, %v571
    %v573 = vpop.f32.mrb[0].mxu0
    %574 = vdwg.mxu0
    %v591 = vunpack.c.l.b16 %v440
    %v592 = vunpack.c.l.b16 %v441
    %v593 = vunpack.c.l.b16 %v442
    %v594 = vunpack.c.l.b16 %v443
    %v595 = vunpack.c.l.b16 %v444
    %v596 = vunpack.c.l.b16 %v445
    %v597 = vunpack.c.l.b16 %v446
    %v598 = vunpack.c.l.b16 %v447
    %v599 = vunpack.c.l.b16 %v448
    %v600 = vunpack.c.l.b16 %v449
    %v601 = vunpack.c.l.b16 %v450
    %v602 = vunpack.c.l.b16 %v451
    %v603 = vunpack.c.l.b16 %v452
    %v604 = vunpack.c.l.b16 %v453
    %v605 = vunpack.c.l.b16 %v454
    %v606 = vunpack.c.l.b16 %v455
    %v607 = vpack.c.b16 %v592, %v591
    %v608 = vpack.c.b16 %v594, %v593
    %v609 = vpack.c.b16 %v596, %v595
    %v610 = vpack.c.b16 %v598, %v597
    %v611 = vpack.c.b16 %v600, %v599
    %v612 = vpack.c.b16 %v602, %v601
    %v613 = vpack.c.b16 %v604, %v603
    %v614 = vpack.c.b16 %v606, %v605
    %623 = vmatprep.subr.bf16.mxu0 0
    %624 = vmatpush1.bf16.msra.mxu0 %v607
    %625 = vmatprep.subr.bf16.mxu0 0
    %626 = vmatpush1.bf16.msra.mxu0 %v608
    %627 = vmatprep.subr.bf16.mxu0 0
    %628 = vmatpush1.bf16.msra.mxu0 %v609
    %629 = vmatprep.subr.bf16.mxu0 0
    %630 = vmatpush1.bf16.msra.mxu0 %v610
    %631 = vmatprep.subr.bf16.mxu0 0
    %632 = vmatpush1.bf16.msra.mxu0 %v611
    %633 = vmatprep.subr.bf16.mxu0 0
    %634 = vmatpush1.bf16.msra.mxu0 %v612
    %635 = vmatprep.subr.bf16.mxu0 0
    %636 = vmatpush1.bf16.msra.mxu0 %v613
    %637 = vmatprep.subr.bf16.mxu0 0
    %638 = vmatpush1.bf16.msra.mxu0 %v614
    %639 = vmatprep.subr.bf16.mxu0 0
    %640 = vmatpush1.bf16.msra.mxu0 0
    %641 = vmatprep.subr.bf16.mxu0 0
    %642 = vmatpush1.bf16.msra.mxu0 0
    %643 = vmatprep.subr.bf16.mxu0 0
    %644 = vmatpush1.bf16.msra.mxu0 0
    %645 = vmatprep.subr.bf16.mxu0 0
    %646 = vmatpush1.bf16.msra.mxu0 0
    %647 = vmatprep.subr.bf16.mxu0 0
    %648 = vmatpush1.bf16.msra.mxu0 0
    %649 = vmatprep.subr.bf16.mxu0 0
    %650 = vmatpush1.bf16.msra.mxu0 0
    %651 = vmatprep.subr.bf16.mxu0 0
    %652 = vmatpush1.bf16.msra.mxu0 0
    %653 = vmatprep.subr.bf16.mxu0 0
    %654 = vmatpush1.bf16.msra.mxu0 0
    %655 = vmatprep.mubr.bf16.mxu0 0
    %656 = vmatmul.mubr.bf16.gmra.mrb[0].mxu0 %v438
    %v657 = vpop.f32.mrb[0].mxu0
    %v658 = vadd.f32 %v569, %v657
    %v659 = vpop.f32.mrb[0].mxu0
    %v660 = vpop.f32.mrb[0].mxu0
    %v661 = vadd.f32 %v572, %v660
    %v662 = vpop.f32.mrb[0].mxu0
    %663 = vdwg.mxu0
    %s664 = scalar_lea.vmem [#allocation9], 128
    %v665 = vld [vmem:[%s664] sm:$0xf]
    %v666 = vld [vmem:[%s664 + $0x4] sm:$0xf]
    %v667 = vld [vmem:[%s664 + $0x8] sm:$0xf]
    %v668 = vld [vmem:[%s664 + $0xc] sm:$0xf]
    %v669 = vld [vmem:[%s664 + $0x10] sm:$0xf]
    %v670 = vld [vmem:[%s664 + $0x14] sm:$0xf]
    %v671 = vld [vmem:[%s664 + $0x18] sm:$0xf]
    %v672 = vld [vmem:[%s664 + $0x1c] sm:$0xf]
    %v673 = vld [vmem:[%s664 + $0x20] sm:$0xf]
    %v674 = vld [vmem:[%s664 + $0x24] sm:$0xf]
    %v675 = vld [vmem:[%s664 + $0x28] sm:$0xf]
    %v676 = vld [vmem:[%s664 + $0x2c] sm:$0xf]
    %v677 = vld [vmem:[%s664 + $0x30] sm:$0xf]
    %v678 = vld [vmem:[%s664 + $0x34] sm:$0xf]
    %v679 = vld [vmem:[%s664 + $0x38] sm:$0xf]
    %v680 = vld [vmem:[%s664 + $0x3c] sm:$0xf]
    %v683 = vrot.slane %v438, 1
    %v684 = vrot.slane %v439, 1
    %v685 = vsel %vm322, %v683, %v684
    %v703 = vunpack.c.l.b16 %v665
    %v704 = vunpack.c.l.b16 %v666
    %v705 = vunpack.c.l.b16 %v667
    %v706 = vunpack.c.l.b16 %v668
    %v707 = vunpack.c.l.b16 %v669
    %v708 = vunpack.c.l.b16 %v670
    %v709 = vunpack.c.l.b16 %v671
    %v710 = vunpack.c.l.b16 %v672
    %v711 = vunpack.c.l.b16 %v673
    %v712 = vunpack.c.l.b16 %v674
    %v713 = vunpack.c.l.b16 %v675
    %v714 = vunpack.c.l.b16 %v676
    %v715 = vunpack.c.l.b16 %v677
    %v716 = vunpack.c.l.b16 %v678
    %v717 = vunpack.c.l.b16 %v679
    %v718 = vunpack.c.l.b16 %v680
    %v719 = vpack.c.b16 %v704, %v703
    %v720 = vpack.c.b16 %v706, %v705
    %v721 = vpack.c.b16 %v708, %v707
    %v722 = vpack.c.b16 %v710, %v709
    %v723 = vpack.c.b16 %v712, %v711
    %v724 = vpack.c.b16 %v714, %v713
    %v725 = vpack.c.b16 %v716, %v715
    %v726 = vpack.c.b16 %v718, %v717
    %735 = vmatprep.subr.bf16.mxu0 0
    %736 = vmatpush1.bf16.msra.mxu0 %v719
    %737 = vmatprep.subr.bf16.mxu0 0
    %738 = vmatpush1.bf16.msra.mxu0 %v720
    %739 = vmatprep.subr.bf16.mxu0 0
    %740 = vmatpush1.bf16.msra.mxu0 %v721
    %741 = vmatprep.subr.bf16.mxu0 0
    %742 = vmatpush1.bf16.msra.mxu0 %v722
    %743 = vmatprep.subr.bf16.mxu0 0
    %744 = vmatpush1.bf16.msra.mxu0 %v723
    %745 = vmatprep.subr.bf16.mxu0 0
    %746 = vmatpush1.bf16.msra.mxu0 %v724
    %747 = vmatprep.subr.bf16.mxu0 0
    %748 = vmatpush1.bf16.msra.mxu0 %v725
    %749 = vmatprep.subr.bf16.mxu0 0
    %750 = vmatpush1.bf16.msra.mxu0 %v726
    %751 = vmatprep.subr.bf16.mxu0 0
    %752 = vmatpush1.bf16.msra.mxu0 0
    %753 = vmatprep.subr.bf16.mxu0 0
    %754 = vmatpush1.bf16.msra.mxu0 0
    %755 = vmatprep.subr.bf16.mxu0 0
    %756 = vmatpush1.bf16.msra.mxu0 0
    %757 = vmatprep.subr.bf16.mxu0 0
    %758 = vmatpush1.bf16.msra.mxu0 0
    %759 = vmatprep.subr.bf16.mxu0 0
    %760 = vmatpush1.bf16.msra.mxu0 0
    %761 = vmatprep.subr.bf16.mxu0 0
    %762 = vmatpush1.bf16.msra.mxu0 0
    %763 = vmatprep.subr.bf16.mxu0 0
    %764 = vmatpush1.bf16.msra.mxu0 0
    %765 = vmatprep.subr.bf16.mxu0 0
    %766 = vmatpush1.bf16.msra.mxu0 0
    %767 = vmatprep.mubr.bf16.mxu0 0
    %768 = vmatmul.mubr.bf16.gmra.mrb[0].mxu0 %v685
    %v769 = vpop.f32.mrb[0].mxu0
    %v770 = vadd.f32 0.0, %v769
    %v771 = vpop.f32.mrb[0].mxu0
    %v772 = vpop.f32.mrb[0].mxu0
    %v773 = vadd.f32 0.0, %v772
    %v774 = vpop.f32.mrb[0].mxu0
    %775 = vdwg.mxu0
    %v776 = vadd.f32 %v658, %v770
    %v777 = vadd.f32 %v661, %v773
    %v778 = vlaneseq
    %v779 = vshrl.u32 %v778, 7
    %v780 = vsub.s32 0, %v779
    %v781 = vrot.slane %v66, %v780
    %v782 = vadd.f32 %v776, %v781
    %v783 = vadd.f32 %v777, %v781
    %v784 = vld [vmem:[#allocation4] sm:$0xff]
    %v785 = vld [vmem:[#allocation4 + $0x8] sm:$0xff]
    %v786 = vadd.f32 %v782, %v784
    %v787 = vadd.f32 %v783, %v785
    %788 = vst [vmem:[#allocation10] sm:$0xff] %v786
    %789 = vst [vmem:[#allocation10 + $0x8] sm:$0xff] %v787
    // Predicated region
    $region34: #{tpu_custom_call.1} parent=1 // pred_check
      _
    $region35: #{tpu_custom_call.1} parent=1 // pred_check_branch
      %791 = sbr.rel (0) target = $region37
    $region36: #{tpu_custom_call.1} parent=1 // pred_region
      %s793 = ssub.s32 256, 256
      %794 = vsyncadd [#allocation6], %s793
      %s795 = sshll.u32 [#allocation10], 4
      %s796 = int_to_ptr.vmem [resolvable:$true] %s795
      %801 = dma.vmem_to_hbm [thread:$0]  %s796, 256, %s5, [#allocation6], 128, 128, 8
    $region37: #{tpu_custom_call.1} parent=1 // pred_fallthru
      _
    // Predicated region
    $region38: #{tpu_custom_call.1} parent=1 // pred_check
      _
    $region39: #{tpu_custom_call.1} parent=1 // pred_check_branch
      %803 = sbr.rel (0) target = $region41
    $region40: #{tpu_custom_call.1} parent=1 // pred_region
      %804 = dma.done [#allocation6], 256
    $region41: #{tpu_custom_call.1} parent=1 // pred_fallthru
      _
    %805 = vsyncpa [#allocation5], 1
    %806 = vsyncpa [#allocation8], 1
    %807 = vsyncpa [#allocation6], 1

</llo_original>
